<compile_context>
chip_gen: v5e
topology: v5e:2x2
jax: 0.10.0
libtpu: 0.0.40
codegen_flags: <defaults>
</compile_context>

<pallas_src>
import functools

import jax
import jax.numpy as jnp
from jax.experimental import pallas as pl
from jax.experimental.pallas import tpu as pltpu


# ---------------------------------------------------------------------------
# Pallas kernel: fused  W @ X_T + bias -> LeakyReLU  for pan AND ms
# ---------------------------------------------------------------------------
def _fused_down_kernel(w_ref, b_ref, xpan_ref, xms_ref, opan_ref, oms_ref, *,
                       negative_slope):
    # w_ref: (Cout, K)   b_ref: (Cout, 1) f32
    # x*_ref: (1, K, tm) o*_ref: (1, Cout, tm)   -- lane-dense output blocks
    cout = opan_ref.shape[1]
    tm = opan_ref.shape[2]
    w = w_ref[...]                                   # resident across grid steps
    # Hoisted bias lane-broadcast: emitted once per grid step, not per stream.
    bias = jnp.broadcast_to(b_ref[...], (cout, tm))
    for x_ref, o_ref in ((xpan_ref, opan_ref), (xms_ref, oms_ref)):
        x = x_ref[0]                                 # (K, tm)
        acc = jnp.dot(w, x, preferred_element_type=jnp.float32) + bias
        o_ref[0] = jnp.where(acc >= 0, acc, negative_slope * acc).astype(o_ref.dtype)


# ---------------------------------------------------------------------------
# Hardware / tiling helpers
# ---------------------------------------------------------------------------
def _tpu_vmem_capacity_bytes(default=64 * 1024 * 1024):
    """Physical VMEM per core; conservative (v7x-safe) default if unknown."""
    try:
        info = pltpu.get_tpu_info()
        cap = getattr(info, "vmem_capacity_bytes", None)
        if cap:
            return max(int(cap), 32 * 1024 * 1024)
    except Exception:
        pass
    return default


def _choose_row_tile(M, K, Cout, in_bytes, out_bytes, capacity):
    """Pick the column-tile size tm along the Ho*Wo axis.

    Budget: 2 input streams + 2 output streams, each double-buffered:
        per_col = 2*2*K*in_bytes + 2*2*Cout*out_bytes
    Prefers the full extent (single block, always legal) or a 128-multiple
    divisor of M so no ragged tail exists; otherwise relies on Pallas edge
    masking (no jnp.pad / post-slice HBM passes)."""
    hard_cap = 4096 if capacity >= (96 << 20) else 2048   # v6e roomy, v7x tighter
    budget = int(0.4 * capacity)                           # leave compiler headroom
    per_col = 4 * (K * in_bytes + Cout * out_bytes)
    cap = min(hard_cap, max(128, budget // per_col))
    if M <= cap:
        return M                                           # full-extent block
    cap -= cap % 128
    cap = max(cap, 128)
    for cand in range(cap, 127, -128):                     # largest 128-mult divisor
        if M % cand == 0:
            return cand
    return cap                                             # ragged tail -> edge masking


# ---------------------------------------------------------------------------
# Down block (pan + ms fused in one pallas_call):
#   Conv2d(Cin, Cout, k=scale, stride=scale, pad=0) + LeakyReLU
# ---------------------------------------------------------------------------
def _to_patches_t(x, scale, Ho, Wo, dtype):
    """(B, Cin, H, W) -> (B, Cin*s*s, Ho*Wo) in `dtype`.

    Cast happens BEFORE the transpose so the (single) materializing pass moves
    half the bytes when dtype is bf16.  K ordering (c, si, sj) matches
    weight.reshape(Cout, Cin*s*s)."""
    B, Cin, H, W = x.shape
    x = x.astype(dtype)
    if H != Ho * scale or W != Wo * scale:
        x = x[:, :, :Ho * scale, :Wo * scale]
    xp = x.reshape(B, Cin, Ho, scale, Wo, scale)
    xp = jnp.transpose(xp, (0, 1, 3, 5, 2, 4))             # (B, Cin, s, s, Ho, Wo)
    return xp.reshape(B, Cin * scale * scale, Ho * Wo)


def _fused_down(pan, ms, weight, bias, scale, *, compute_dtype, negative_slope):
    B, Cin, H, W = pan.shape
    Cout = weight.shape[0]
    Ho, Wo = H // scale, W // scale
    K = Cin * scale * scale
    M = Ho * Wo
    out_dtype = pan.dtype

    xp_pan = _to_patches_t(pan, scale, Ho, Wo, compute_dtype)
    xp_ms = _to_patches_t(ms, scale, Ho, Wo, compute_dtype)
    w2d = weight.reshape(Cout, K).astype(compute_dtype)
    b2d = bias.reshape(Cout, 1).astype(jnp.float32)

    capacity = _tpu_vmem_capacity_bytes()
    in_bytes = jnp.dtype(compute_dtype).itemsize
    out_bytes = jnp.dtype(out_dtype).itemsize
    tm = _choose_row_tile(M, K, Cout, in_bytes, out_bytes, capacity)

    # v7x has 2 TensorCores sharding the "parallel" grid axes: make sure the
    # grid has at least 2 steps when the problem allows it.
    if B * pl.cdiv(M, tm) < 2 and tm >= 256:
        tm = max(128, (((tm + 1) // 2) + 127) // 128 * 128)
    n_m = pl.cdiv(M, tm)

    # Explicit scoped-VMEM limit (v5e default is only 16 MiB; v7x physical is
    # 64 MiB).  Budget = double-buffered blocks + resident weight/bias + slack.
    per_col = 4 * (K * in_bytes + Cout * out_bytes)
    vmem_needed = per_col * tm + 2 * Cout * (K * in_bytes + 4) + (1 << 20)
    vmem_limit = int(min(int(0.85 * capacity), max(2 * vmem_needed, 32 << 20)))

    out_sds = jax.ShapeDtypeStruct((B, Cout, M), out_dtype)
    opan, oms = pl.pallas_call(
        functools.partial(_fused_down_kernel,
                          negative_slope=float(negative_slope)),
        out_shape=(out_sds, out_sds),
        grid=(B, n_m),
        in_specs=[
            pl.BlockSpec((Cout, K), lambda b, i: (0, 0)),
            pl.BlockSpec((Cout, 1), lambda b, i: (0, 0)),
            pl.BlockSpec((1, K, tm), lambda b, i: (b, 0, i)),
            pl.BlockSpec((1, K, tm), lambda b, i: (b, 0, i)),
        ],
        out_specs=[
            pl.BlockSpec((1, Cout, tm), lambda b, i: (b, 0, i)),
            pl.BlockSpec((1, Cout, tm), lambda b, i: (b, 0, i)),
        ],
        compiler_params=pltpu.CompilerParams(
            dimension_semantics=("parallel", "parallel"),
            vmem_limit_bytes=vmem_limit),
    )(w2d, b2d, xp_pan, xp_ms)

    # Output is already channel-major per image -> NCHW via a free reshape.
    return opan.reshape(B, Cout, Ho, Wo), oms.reshape(B, Cout, Ho, Wo)


# ---------------------------------------------------------------------------
# Stage (sample_mode='down', pan_pre is None)
# ---------------------------------------------------------------------------
def init_stage_params(key, in_channels, out_channels, scale):
    kw, kb = jax.random.split(key)
    fan_in = in_channels * scale * scale
    bound = 1.0 / jnp.sqrt(fan_in)
    weight = jax.random.uniform(
        kw, (out_channels, in_channels, scale, scale),
        minval=-bound, maxval=bound, dtype=jnp.float32)
    bias = jax.random.uniform(
        kb, (out_channels,), minval=-bound, maxval=bound, dtype=jnp.float32)
    return {"weight": weight, "bias": bias}


@functools.partial(jax.jit,
                   static_argnames=("scale", "compute_dtype", "negative_slope"))
def stage_forward(params, pan, ms, scale=2, compute_dtype=jnp.bfloat16,
                  negative_slope=0.01):
    # negative_slope=0.01 matches nn.LeakyReLU() (PyTorch default in the spec).
    # TODO(synk): FusionMamba source unavailable; modeled as identity.
    pan_fm, ms_fm = pan, ms
    pan_skip, ms_skip = pan_fm, ms_fm
    pan_out, ms_out = _fused_down(
        pan_fm, ms_fm, params["weight"], params["bias"], scale,
        compute_dtype=compute_dtype, negative_slope=negative_slope)
    return pan_out, ms_out, pan_skip, ms_skip


# ---------------------------------------------------------------------------
# Reference (plain JAX) for a correctness check of the fused kernel.
# ---------------------------------------------------------------------------
def _down_ref(x_nchw, weight, bias, scale, negative_slope=0.01):
    out = jax.lax.conv_general_dilated(
        x_nchw, weight, window_strides=(scale, scale), padding="VALID",
        dimension_numbers=("NCHW", "OIHW", "NCHW"))
    out = out + bias.reshape(1, -1, 1, 1)
    return jnp.where(out >= 0, out, negative_slope * out)


if __name__ == "__main__":
    # Small shapes consistent with Stage(in_channels=4, out_channels=8, H=16, W=16)
    N, Cin, Cout, H, W, scale = 2, 4, 8, 16, 16, 2

    key = jax.random.PRNGKey(0)
    k_pan, k_ms, k_par = jax.random.split(key, 3)
    pan = jax.random.normal(k_pan, (N, Cin, H, W), dtype=jnp.float32)
    ms = jax.random.normal(k_ms, (N, Cin, H, W), dtype=jnp.float32)
    params = init_stage_params(k_par, Cin, Cout, scale)

    pan_ref = _down_ref(pan, params["weight"], params["bias"], scale)
    ms_ref = _down_ref(ms, params["weight"], params["bias"], scale)

    # 1) default fast path: bf16 X/W streams, f32 accumulation.
    pan_out, ms_out, pan_skip, ms_skip = stage_forward(params, pan, ms, scale=scale)
    jax.block_until_ready((pan_out, ms_out, pan_skip, ms_skip))

    assert pan_out.shape == (N, Cout, H // scale, W // scale)
    assert ms_out.shape == (N, Cout, H // scale, W // scale)
    assert pan_skip.shape == (N, Cin, H, W) and ms_skip.shape == (N, Cin, H, W)
    assert jnp.allclose(pan_out, pan_ref, atol=5e-2, rtol=5e-2)
    assert jnp.allclose(ms_out, ms_ref, atol=5e-2, rtol=5e-2)

    # 2) f32 path: exact (tight tolerance) check of the GEMM / bias / LeakyReLU.
    pan32, ms32, _, _ = stage_forward(params, pan, ms, scale=scale,
                                      compute_dtype=jnp.float32)
    jax.block_until_ready((pan32, ms32))
    assert jnp.allclose(pan32, pan_ref, atol=1e-5, rtol=1e-5)
    assert jnp.allclose(ms32, ms_ref, atol=1e-5, rtol=1e-5)

    print("KERNEL_OK")
</pallas_src>

<mosaic_0001>
module attributes {stable_mosaic.version = 11 : i64} {
  func.func @_fused_down_kernel(%arg0: i32, %arg1: i32, %arg2: memref<8x16xbf16, #tpu.memory_space<vmem>>, %arg3: memref<8x1xf32, #tpu.memory_space<vmem>>, %arg4: memref<1x16x64xbf16, #tpu.memory_space<vmem>>, %arg5: memref<1x16x64xbf16, #tpu.memory_space<vmem>>, %arg6: memref<1x8x64xf32, #tpu.memory_space<vmem>>, %arg7: memref<1x8x64xf32, #tpu.memory_space<vmem>>) attributes {dimension_semantics = [#tpu.dimension_semantics<parallel>, #tpu.dimension_semantics<parallel>], iteration_bounds = array<i64: 2, 1>, scalar_prefetch = 0 : i64, scratch_operands = 0 : i64, tpu.core_type = #tpu.core_type<tc>, window_params = [{pipeline_mode = #tpu.pipeline_mode<synchronous>, transform_indices = @transform_0, window_bounds = array<i64: 8, 16>}, {pipeline_mode = #tpu.pipeline_mode<synchronous>, transform_indices = @transform_1, window_bounds = array<i64: 8, 1>}, {transform_indices = @transform_2, window_bounds = array<i64: 1, 16, 64>}, {transform_indices = @transform_3, window_bounds = array<i64: 1, 16, 64>}, {transform_indices = @transform_4, window_bounds = array<i64: 1, 8, 64>}, {transform_indices = @transform_5, window_bounds = array<i64: 1, 8, 64>}]} {
    %c0 = arith.constant 0 : index
    %c0_0 = arith.constant 0 : index
    %0 = vector.load %arg2[%c0, %c0_0] : memref<8x16xbf16, #tpu.memory_space<vmem>>, vector<8x16xbf16>
    %c0_1 = arith.constant 0 : index
    %c0_2 = arith.constant 0 : index
    %1 = vector.load %arg3[%c0_1, %c0_2] : memref<8x1xf32, #tpu.memory_space<vmem>>, vector<8x1xf32>
    %2 = vector.shape_cast %1 : vector<8x1xf32> to vector<8x1xf32>
    %3 = vector.broadcast %2 : vector<8x1xf32> to vector<8x64xf32>
    %c0_3 = arith.constant 0 : index
    %c0_4 = arith.constant 0 : index
    %c0_5 = arith.constant 0 : index
    %4 = vector.load %arg4[%c0_3, %c0_4, %c0_5] : memref<1x16x64xbf16, #tpu.memory_space<vmem>>, vector<1x16x64xbf16>
    %5 = vector.shape_cast %4 : vector<1x16x64xbf16> to vector<16x64xbf16>
    %cst = arith.constant dense<0.000000e+00> : vector<8x64xf32>
    %6 = tpu.matmul %0, %5, %cst {dimension_numbers = #tpu.dot_dimension_numbers<[1], [0], [0], [1], [0, 0, 1, 1], [], []>} : vector<8x16xbf16>, vector<16x64xbf16>, vector<8x64xf32> -> vector<8x64xf32>
    %7 = arith.addf %6, %3 : vector<8x64xf32>
    %cst_6 = arith.constant 0.000000e+00 : f32
    %8 = vector.broadcast %cst_6 : f32 to vector<8x64xf32>
    %9 = arith.cmpf oge, %7, %8 : vector<8x64xf32>
    %cst_7 = arith.constant 0.00999999977 : f32
    %10 = vector.broadcast %cst_7 : f32 to vector<8x64xf32>
    %11 = arith.mulf %10, %7 : vector<8x64xf32>
    %12 = arith.select %9, %7, %11 : vector<8x64xi1>, vector<8x64xf32>
    %c0_8 = arith.constant 0 : index
    %c0_9 = arith.constant 0 : index
    %c0_10 = arith.constant 0 : index
    %13 = vector.load %arg6[%c0_8, %c0_9, %c0_10] : memref<1x8x64xf32, #tpu.memory_space<vmem>>, vector<1x8x64xf32>
    %14 = vector.shape_cast %13 : vector<1x8x64xf32> to vector<8x64xf32>
    %15 = vector.shape_cast %12 : vector<8x64xf32> to vector<1x8x64xf32>
    tpu.vector_store %arg6[%c0_8, %c0_9, %c0_10], %15 {strides = array<i32>} : memref<1x8x64xf32, #tpu.memory_space<vmem>>, vector<1x8x64xf32>,
    %c0_11 = arith.constant 0 : index
    %c0_12 = arith.constant 0 : index
    %c0_13 = arith.constant 0 : index
    %16 = vector.load %arg5[%c0_11, %c0_12, %c0_13] : memref<1x16x64xbf16, #tpu.memory_space<vmem>>, vector<1x16x64xbf16>
    %17 = vector.shape_cast %16 : vector<1x16x64xbf16> to vector<16x64xbf16>
    %cst_14 = arith.constant dense<0.000000e+00> : vector<8x64xf32>
    %18 = tpu.matmul %0, %17, %cst_14 {dimension_numbers = #tpu.dot_dimension_numbers<[1], [0], [0], [1], [0, 0, 1, 1], [], []>} : vector<8x16xbf16>, vector<16x64xbf16>, vector<8x64xf32> -> vector<8x64xf32>
    %19 = arith.addf %18, %3 : vector<8x64xf32>
    %cst_15 = arith.constant 0.000000e+00 : f32
    %20 = vector.broadcast %cst_15 : f32 to vector<8x64xf32>
    %21 = arith.cmpf oge, %19, %20 : vector<8x64xf32>
    %cst_16 = arith.constant 0.00999999977 : f32
    %22 = vector.broadcast %cst_16 : f32 to vector<8x64xf32>
    %23 = arith.mulf %22, %19 : vector<8x64xf32>
    %24 = arith.select %21, %19, %23 : vector<8x64xi1>, vector<8x64xf32>
    %c0_17 = arith.constant 0 : index
    %c0_18 = arith.constant 0 : index
    %c0_19 = arith.constant 0 : index
    %25 = vector.load %arg7[%c0_17, %c0_18, %c0_19] : memref<1x8x64xf32, #tpu.memory_space<vmem>>, vector<1x8x64xf32>
    %26 = vector.shape_cast %25 : vector<1x8x64xf32> to vector<8x64xf32>
    %27 = vector.shape_cast %24 : vector<8x64xf32> to vector<1x8x64xf32>
    tpu.vector_store %arg7[%c0_17, %c0_18, %c0_19], %27 {strides = array<i32>} : memref<1x8x64xf32, #tpu.memory_space<vmem>>, vector<1x8x64xf32>,
    return
  }
  func.func @transform_0(%arg0: i32, %arg1: i32) -> (i32, i32) {
    %c0_i32 = arith.constant 0 : i32
    %c0_i32_0 = arith.constant 0 : i32
    %c0_i32_1 = arith.constant 0 : i32
    return %c0_i32, %c0_i32_0 : i32, i32
  }
  func.func @transform_1(%arg0: i32, %arg1: i32) -> (i32, i32) {
    %c0_i32 = arith.constant 0 : i32
    %c0_i32_0 = arith.constant 0 : i32
    %c0_i32_1 = arith.constant 0 : i32
    return %c0_i32, %c0_i32_0 : i32, i32
  }
  func.func @transform_2(%arg0: i32, %arg1: i32) -> (i32, i32, i32) {
    %c0_i32 = arith.constant 0 : i32
    %c0_i32_0 = arith.constant 0 : i32
    return %arg0, %c0_i32, %arg1 : i32, i32, i32
  }
  func.func @transform_3(%arg0: i32, %arg1: i32) -> (i32, i32, i32) {
    %c0_i32 = arith.constant 0 : i32
    %c0_i32_0 = arith.constant 0 : i32
    return %arg0, %c0_i32, %arg1 : i32, i32, i32
  }
  func.func @transform_4(%arg0: i32, %arg1: i32) -> (i32, i32, i32) {
    %c0_i32 = arith.constant 0 : i32
    %c0_i32_0 = arith.constant 0 : i32
    return %arg0, %c0_i32, %arg1 : i32, i32, i32
  }
  func.func @transform_5(%arg0: i32, %arg1: i32) -> (i32, i32, i32) {
    %c0_i32 = arith.constant 0 : i32
    %c0_i32_0 = arith.constant 0 : i32
    return %arg0, %c0_i32, %arg1 : i32, i32, i32
  }
}

</mosaic_0001>

<llo_original>
// kernel: stage_forward.1
$region0: #{stage_forward.1}
  #allocation0 [shape = 'u32[]', space=smem, size = 0x4, offset = 0x4, fixed_abs, tag = 'smem constant byte address 0x4 - core index']
  #allocation1 [shape = 'u32[72,128]{1,0:T(1,128)}', space=vmem, size = 0x9000, scoped, tag = 'internal scratch']
  %s0 = inlined_call_operand.vmem [shape: bf16[8,16], index: 0, kind: input, shape index: {}]
  %s1 = inlined_call_operand.vmem [shape: f32[8,1], index: 1, kind: input, shape index: {}]
  %s2 = inlined_call_operand.vmem [shape: bf16[2,16,64], index: 2, kind: input, shape index: {}]
  %s3 = inlined_call_operand.vmem [shape: bf16[2,16,64], index: 3, kind: input, shape index: {}]
  %s4 = inlined_call_operand.vmem [shape: f32[2,8,64], index: 4, kind: output, shape index: {0}]
  %s5 = inlined_call_operand.vmem [shape: f32[2,8,64], index: 5, kind: output, shape index: {1}]
  %6 = xla_tuple %s4, %s5
  %s7 = sld [smem:[#allocation0]]
  $region57: #{stage_forward.1} parent=0
    _
  %s9 = ssub.s32 1, %s7
  %s10 = scalar_select 0, %s9, %s7
  loop: start=0, step=1, limit=4
  $region2: #{stage_forward.1} parent=0 // loop_pre_header
    _
  $region3: #{stage_forward.1} parent=0 // loop_header
    %s12 = sphi 0, %s16
    %p13 = scmp.ge.s32.totalorder %s12, 4
    %s19 = sphi 0, %s31
    %s20 = sphi 0, %s27
    %s21 = sphi 0, %s19
    %s22 = sphi 0, %s20
    %s23 = sphi 0, %s21
    %s24 = sphi 0, %s22
    %s32 = sphi 0, %s32
    %s34 = sphi 0, %s32
    %s35 = sphi 0, %s34
    %s49 = sphi 0, %s35
    %s53 = sphi 0, %s53
    %s55 = sphi 0, %s53
    %s56 = sphi 0, %s55
    %s70 = sphi 0, %s56
    %s78 = sphi 0, %s80
    %s81 = sphi 0, %s78
    %s82 = sphi 0, %s81
    %s98 = sphi 0, %s82
    %s106 = sphi 0, %s108
    %s109 = sphi 0, %s106
    %s110 = sphi 0, %s109
    %s126 = sphi 0, %s110
    %s134 = sphi 0, %s136
    %s137 = sphi 0, %s134
    %s138 = sphi 0, %s137
    %s154 = sphi 0, %s138
    %s162 = sphi 0, %s164
    %s165 = sphi 0, %s162
    %s166 = sphi 0, %s165
    %s182 = sphi 0, %s166
  $region4: #{stage_forward.1} parent=0 // loop_header_branch
    %15 = sbr.rel (%p13) target = $region8
  $region5: #{stage_forward.1} parent=0 // loop_body
    %s17 = ssub.s32 %s12, 1
    %s18 = ssub.s32 %s12, 2
    %s25 = sadd.s32 1, %s20
    %p26 = scmp.ge.s32.totalorder %s25, 1
    %s27 = scalar_select %p26, 0, %s25
    %s28 = sadd.s32 1, %s19
    %s29 = scalar_select %p26, %s28, %s19
    %p30 = scmp.ge.s32.totalorder %s29, 2
    %s31 = scalar_select %p30, 0, %s29
    %s33 = sadd.s32 %s32, 1
    %p36 = scmp.eq.s32.totalorder %s12, 1
    %p37 = scmp.ne.s32.totalorder %s32, %s34
    %p38 = scmp.eq.s32.totalorder %s12, 0
    %p39 = por %p37, %p38
    %p40 = scmp.ne.s32.totalorder %s32, %s34
    %p41 = scmp.eq.s32.totalorder %s17, 1
    %p42 = por %p40, %p41
    %p43 = scmp.ne.s32.totalorder %s34, %s35
    %p44 = scmp.eq.s32.totalorder %s17, 0
    %p45 = por %p43, %p44
    %p46 = scmp.ne.s32.totalorder %s34, %s35
    %p47 = scmp.eq.s32.totalorder %s18, 1
    %p48 = por %p46, %p47
    %p50 = scmp.ne.s32.totalorder %s35, %s49
    %p51 = scmp.eq.s32.totalorder %s18, 0
    %p52 = por %p50, %p51
    %s54 = sadd.s32 %s53, 1
    %p57 = scmp.eq.s32.totalorder %s12, 1
    %p58 = scmp.ne.s32.totalorder %s53, %s55
    %p59 = scmp.eq.s32.totalorder %s12, 0
    %p60 = por %p58, %p59
    %p61 = scmp.ne.s32.totalorder %s53, %s55
    %p62 = scmp.eq.s32.totalorder %s17, 1
    %p63 = por %p61, %p62
    %p64 = scmp.ne.s32.totalorder %s55, %s56
    %p65 = scmp.eq.s32.totalorder %s17, 0
    %p66 = por %p64, %p65
    %p67 = scmp.ne.s32.totalorder %s55, %s56
    %p68 = scmp.eq.s32.totalorder %s18, 1
    %p69 = por %p67, %p68
    %p71 = scmp.ne.s32.totalorder %s56, %s70
    %p72 = scmp.eq.s32.totalorder %s18, 0
    %p73 = por %p71, %p72
    %s74 = ssub.s32 %s19, %s31
    %s75 = ssub.s32 %s20, %s27
    %s76 = sor.u32 %s74, %s75
    %p77 = scmp.eq.s32.totalorder %s76, 0
    %s79 = sadd.s32 %s78, 1
    %s80 = scalar_select %p77, %s78, %s79
    %p83 = pneg %p77
    %p84 = scmp.eq.s32.totalorder %s12, 1
    %p85 = por %p83, %p84
    %p86 = scmp.ne.s32.totalorder %s78, %s81
    %p87 = scmp.eq.s32.totalorder %s12, 0
    %p88 = por %p86, %p87
    %p89 = scmp.ne.s32.totalorder %s78, %s81
    %p90 = scmp.eq.s32.totalorder %s17, 1
    %p91 = por %p89, %p90
    %p92 = scmp.ne.s32.totalorder %s81, %s82
    %p93 = scmp.eq.s32.totalorder %s17, 0
    %p94 = por %p92, %p93
    %p95 = scmp.ne.s32.totalorder %s81, %s82
    %p96 = scmp.eq.s32.totalorder %s18, 1
    %p97 = por %p95, %p96
    %p99 = scmp.ne.s32.totalorder %s82, %s98
    %p100 = scmp.eq.s32.totalorder %s18, 0
    %p101 = por %p99, %p100
    %s102 = ssub.s32 %s19, %s31
    %s103 = ssub.s32 %s20, %s27
    %s104 = sor.u32 %s102, %s103
    %p105 = scmp.eq.s32.totalorder %s104, 0
    %s107 = sadd.s32 %s106, 1
    %s108 = scalar_select %p105, %s106, %s107
    %p111 = pneg %p105
    %p112 = scmp.eq.s32.totalorder %s12, 1
    %p113 = por %p111, %p112
    %p114 = scmp.ne.s32.totalorder %s106, %s109
    %p115 = scmp.eq.s32.totalorder %s12, 0
    %p116 = por %p114, %p115
    %p117 = scmp.ne.s32.totalorder %s106, %s109
    %p118 = scmp.eq.s32.totalorder %s17, 1
    %p119 = por %p117, %p118
    %p120 = scmp.ne.s32.totalorder %s109, %s110
    %p121 = scmp.eq.s32.totalorder %s17, 0
    %p122 = por %p120, %p121
    %p123 = scmp.ne.s32.totalorder %s109, %s110
    %p124 = scmp.eq.s32.totalorder %s18, 1
    %p125 = por %p123, %p124
    %p127 = scmp.ne.s32.totalorder %s110, %s126
    %p128 = scmp.eq.s32.totalorder %s18, 0
    %p129 = por %p127, %p128
    %s130 = ssub.s32 %s19, %s31
    %s131 = ssub.s32 %s20, %s27
    %s132 = sor.u32 %s130, %s131
    %p133 = scmp.eq.s32.totalorder %s132, 0
    %s135 = sadd.s32 %s134, 1
    %s136 = scalar_select %p133, %s134, %s135
    %p139 = pneg %p133
    %p140 = scmp.eq.s32.totalorder %s12, 1
    %p141 = por %p139, %p140
    %p142 = scmp.ne.s32.totalorder %s134, %s137
    %p143 = scmp.eq.s32.totalorder %s12, 0
    %p144 = por %p142, %p143
    %p145 = scmp.ne.s32.totalorder %s134, %s137
    %p146 = scmp.eq.s32.totalorder %s17, 1
    %p147 = por %p145, %p146
    %p148 = scmp.ne.s32.totalorder %s137, %s138
    %p149 = scmp.eq.s32.totalorder %s17, 0
    %p150 = por %p148, %p149
    %p151 = scmp.ne.s32.totalorder %s137, %s138
    %p152 = scmp.eq.s32.totalorder %s18, 1
    %p153 = por %p151, %p152
    %p155 = scmp.ne.s32.totalorder %s138, %s154
    %p156 = scmp.eq.s32.totalorder %s18, 0
    %p157 = por %p155, %p156
    %s158 = ssub.s32 %s19, %s31
    %s159 = ssub.s32 %s20, %s27
    %s160 = sor.u32 %s158, %s159
    %p161 = scmp.eq.s32.totalorder %s160, 0
    %s163 = sadd.s32 %s162, 1
    %s164 = scalar_select %p161, %s162, %s163
    %p167 = pneg %p161
    %p168 = scmp.eq.s32.totalorder %s12, 1
    %p169 = por %p167, %p168
    %p170 = scmp.ne.s32.totalorder %s162, %s165
    %p171 = scmp.eq.s32.totalorder %s12, 0
    %p172 = por %p170, %p171
    %p173 = scmp.ne.s32.totalorder %s162, %s165
    %p174 = scmp.eq.s32.totalorder %s17, 1
    %p175 = por %p173, %p174
    %p176 = scmp.ne.s32.totalorder %s165, %s166
    %p177 = scmp.eq.s32.totalorder %s17, 0
    %p178 = por %p176, %p177
    %p179 = scmp.ne.s32.totalorder %s165, %s166
    %p180 = scmp.eq.s32.totalorder %s18, 1
    %p181 = por %p179, %p180
    %p183 = scmp.ne.s32.totalorder %s166, %s182
    %p184 = scmp.eq.s32.totalorder %s18, 0
    %p185 = por %p183, %p184
    %p186 = scmp.le.s32.totalorder 1, %s12
    %p187 = scmp.lt.s32.totalorder %s12, 3
    %p188 = pnand %p186, %p187
    %p189 = pneg %p188
    // Predicated region
    $region9: #{stage_forward.1} parent=5 // pred_check
      _
    $region10: #{stage_forward.1} parent=5 // pred_check_branch
      %191 = sbr.rel (%p188) target = $region12
    $region11: #{stage_forward.1} parent=5 // pred_region
      %s192 = ssub.s32 %s12, 1
      // Predicated region
      $region13: #{stage_forward.1} parent=11 // pred_check
        %p193 = pneg %p45
      $region14: #{stage_forward.1} parent=11 // pred_check_branch
        %195 = sbr.rel (%p193) target = $region16
      $region15: #{stage_forward.1} parent=11 // pred_region
        _
      $region16: #{stage_forward.1} parent=11 // pred_fallthru
        _
      // Predicated region
      $region17: #{stage_forward.1} parent=11 // pred_check
        %p196 = pneg %p66
      $region18: #{stage_forward.1} parent=11 // pred_check_branch
        %198 = sbr.rel (%p196) target = $region20
      $region19: #{stage_forward.1} parent=11 // pred_region
        _
      $region20: #{stage_forward.1} parent=11 // pred_fallthru
        _
    $region12: #{stage_forward.1} parent=5 // pred_fallthru
      _
    %p199 = scmp.lt.s32.totalorder %s12, 2
    // Predicated region
    $region21: #{stage_forward.1} parent=5 // pred_check
      %p200 = pneg %p199
    $region22: #{stage_forward.1} parent=5 // pred_check_branch
      %202 = sbr.rel (%p200) target = $region24
    $region23: #{stage_forward.1} parent=5 // pred_region
      // Predicated region
      $region25: #{stage_forward.1} parent=23 // pred_check
        %p203 = pneg %p88
      $region26: #{stage_forward.1} parent=23 // pred_check_branch
        %205 = sbr.rel (%p203) target = $region28
      $region27: #{stage_forward.1} parent=23 // pred_region
        %p206 = scmp.lt.s32.totalorder %s19, 1
        %s207 = scalar_select %p206, %s19, 1
        %p208 = scmp.lt.s32.totalorder %s20, 0
        %s209 = scalar_select %p208, %s20, 0
        %s210 = smul.addr %s207, 2
        %s211 = sadd.s32 %s209, %s210
        %s212 = smul.addr %s211, 4
        %s213 = scalar_lea.vmem %s2, %s212
      $region28: #{stage_forward.1} parent=23 // pred_fallthru
        _
      // Predicated region
      $region29: #{stage_forward.1} parent=23 // pred_check
        %p214 = pneg %p116
      $region30: #{stage_forward.1} parent=23 // pred_check_branch
        %216 = sbr.rel (%p214) target = $region32
      $region31: #{stage_forward.1} parent=23 // pred_region
        %p217 = scmp.lt.s32.totalorder %s19, 1
        %s218 = scalar_select %p217, %s19, 1
        %p219 = scmp.lt.s32.totalorder %s20, 0
        %s220 = scalar_select %p219, %s20, 0
        %s221 = smul.addr %s218, 2
        %s222 = sadd.s32 %s220, %s221
        %s223 = smul.addr %s222, 4
        %s224 = scalar_lea.vmem %s3, %s223
      $region32: #{stage_forward.1} parent=23 // pred_fallthru
        _
    $region24: #{stage_forward.1} parent=5 // pred_fallthru
      _
    %p225 = scmp.le.s32.totalorder 1, %s12
    %p226 = scmp.lt.s32.totalorder %s12, 3
    %p227 = pnand %p225, %p226
    %p228 = pneg %p227
    // Predicated region
    $region33: #{stage_forward.1} parent=5 // pred_check
      _
    $region34: #{stage_forward.1} parent=5 // pred_check_branch
      %230 = sbr.rel (%p227) target = $region36
    $region35: #{stage_forward.1} parent=5 // pred_region
      %s231 = ssub.s32 %s12, 1
      %p232 = pneg %p45
      %p233 = pneg %p42
      %p234 = pneg %p66
      %p235 = pneg %p63
      %p236 = scmp.lt.s32.totalorder %s21, 1
      %s237 = scalar_select %p236, %s21, 1
      %p238 = scmp.lt.s32.totalorder %s22, 0
      %s239 = scalar_select %p238, %s22, 0
      %s240 = smul.addr %s237, 2
      %s241 = sadd.s32 %s239, %s240
      %s242 = smul.addr %s241, 4
      %s243 = scalar_lea.vmem %s2, %s242
      %p244 = pneg %p94
      %p245 = pneg %p91
      %p246 = scmp.lt.s32.totalorder %s21, 1
      %s247 = scalar_select %p246, %s21, 1
      %p248 = scmp.lt.s32.totalorder %s22, 0
      %s249 = scalar_select %p248, %s22, 0
      %s250 = smul.addr %s247, 2
      %s251 = sadd.s32 %s249, %s250
      %s252 = smul.addr %s251, 4
      %s253 = scalar_lea.vmem %s3, %s252
      %p254 = pneg %p122
      %p255 = pneg %p119
      %p256 = pneg %p150
      %p257 = pneg %p147
      %p258 = scmp.lt.s32.totalorder %s21, 1
      %s259 = scalar_select %p258, %s21, 1
      %p260 = scmp.lt.s32.totalorder %s22, 0
      %s261 = scalar_select %p260, %s22, 0
      %s262 = sadd.s32 %s261, %s259
      %s263 = smul.addr %s262, 8
      %s264 = scalar_lea.vmem %s4, %s263
      %p265 = pneg %p178
      %p266 = pneg %p175
      %p267 = scmp.lt.s32.totalorder %s21, 1
      %s268 = scalar_select %p267, %s21, 1
      %p269 = scmp.lt.s32.totalorder %s22, 0
      %s270 = scalar_select %p269, %s22, 0
      %s271 = sadd.s32 %s270, %s268
      %s272 = smul.addr %s271, 8
      %s273 = scalar_lea.vmem %s5, %s272
      %p274 = scmp.lt.s32.totalorder %s21, 1
      %s275 = scalar_select %p274, %s21, 1
      %p276 = scmp.lt.s32.totalorder %s22, 0
      %s277 = scalar_select %p276, %s22, 0
      %s278 = smul.addr %s275, 2
      %s279 = sadd.s32 %s277, %s278
      %s280 = smul.addr %s279, 4
      %s281 = scalar_lea.vmem %s2, %s280
      %p282 = scmp.lt.s32.totalorder %s21, 1
      %s283 = scalar_select %p282, %s21, 1
      %p284 = scmp.lt.s32.totalorder %s22, 0
      %s285 = scalar_select %p284, %s22, 0
      %s286 = smul.addr %s283, 2
      %s287 = sadd.s32 %s285, %s286
      %s288 = smul.addr %s287, 4
      %s289 = scalar_lea.vmem %s3, %s288
      %p290 = scmp.lt.s32.totalorder %s21, 1
      %s291 = scalar_select %p290, %s21, 1
      %p292 = scmp.lt.s32.totalorder %s22, 0
      %s293 = scalar_select %p292, %s22, 0
      %s294 = sadd.s32 %s293, %s291
      %s295 = smul.addr %s294, 8
      %s296 = scalar_lea.vmem %s4, %s295
      %p297 = scmp.lt.s32.totalorder %s21, 1
      %s298 = scalar_select %p297, %s21, 1
      %p299 = scmp.lt.s32.totalorder %s22, 0
      %s300 = scalar_select %p299, %s22, 0
      %s301 = sadd.s32 %s300, %s298
      %s302 = smul.addr %s301, 8
      %s303 = scalar_lea.vmem %s5, %s302
      %v305 = vld [vmem:[%s0] sm:$0xf]
      %v306 = vld [vmem:[%s1] sm:$0xff]
      %308 = vset.pattern.permute.xlu0 0
      %309 = vperm.xlu0 %308, %v306
      %v310 = vpop.permute.xlu0 %309
      %v312 = vld [vmem:[%s281] sm:$0xf]
      %v313 = vld [vmem:[%s281 + $0x4] sm:$0xf]
      %v316 = vunpack.c.l.b16 %v312
      %v317 = vunpack.c.l.b16 %v313
      %v318 = vpack.c.b16 %v317, %v316
      %vm320 = vcmask 130048
      %v322 = vsel %vm320, %v305, 0
      %324 = vmatpush.bf16.msra.mxu0 0
      %325 = vmatpush.bf16.msra.mxu0 0
      %326 = vmatpush.bf16.msra.mxu0 0
      %327 = vmatpush.bf16.msra.mxu0 0
      %328 = vmatpush.bf16.msra.mxu0 0
      %329 = vmatpush.bf16.msra.mxu0 0
      %330 = vmatpush.bf16.msra.mxu0 0
      %331 = vmatpush.bf16.msra.mxu0 %v318
      %332 = vmatmul.bf16.gmra.mxu0 %v322
      %v333 = vpop.f32.mrf.mxu0
      %v334 = vadd.f32 %v310, %v333
      %v335 = vpop.f32.mrf.mxu0
      %336 = vdwg.mxu0
      %vm337 = vcmp.ge.f32.partialorder %v334, 0.0
      %v338 = vmul.f32 %v334, 0.01
      %v339 = vsel %vm337, %v334, %v338
      %vm340 = vcmask 523264
      %341 = vst.msk [vmem:[%s296] sm:$0xff] %vm340, %v339
      %v342 = vld [vmem:[%s289] sm:$0xf]
      %v343 = vld [vmem:[%s289 + $0x4] sm:$0xf]
      %v346 = vunpack.c.l.b16 %v342
      %v347 = vunpack.c.l.b16 %v343
      %v348 = vpack.c.b16 %v347, %v346
      %350 = vmatpush.bf16.msra.mxu0 0
      %351 = vmatpush.bf16.msra.mxu0 0
      %352 = vmatpush.bf16.msra.mxu0 0
      %353 = vmatpush.bf16.msra.mxu0 0
      %354 = vmatpush.bf16.msra.mxu0 0
      %355 = vmatpush.bf16.msra.mxu0 0
      %356 = vmatpush.bf16.msra.mxu0 0
      %357 = vmatpush.bf16.msra.mxu0 %v348
      %358 = vmatmul.bf16.gmra.mxu0 %v322
      %v359 = vpop.f32.mrf.mxu0
      %v360 = vadd.f32 %v310, %v359
      %v361 = vpop.f32.mrf.mxu0
      %362 = vdwg.mxu0
      %vm363 = vcmp.ge.f32.partialorder %v360, 0.0
      %v364 = vmul.f32 %v360, 0.01
      %v365 = vsel %vm363, %v360, %v364
      %366 = vst.msk [vmem:[%s303] sm:$0xff] %vm340, %v365
      %p367 = scmp.lt.s32.totalorder %s21, 1
      %s368 = scalar_select %p367, %s21, 1
      %p369 = scmp.lt.s32.totalorder %s22, 0
      %s370 = scalar_select %p369, %s22, 0
      %s371 = sadd.s32 %s370, %s368
      %s372 = smul.addr %s371, 8
      %s373 = scalar_lea.vmem %s4, %s372
      %p374 = scmp.lt.s32.totalorder %s21, 1
      %s375 = scalar_select %p374, %s21, 1
      %p376 = scmp.lt.s32.totalorder %s22, 0
      %s377 = scalar_select %p376, %s22, 0
      %s378 = sadd.s32 %s377, %s375
      %s379 = smul.addr %s378, 8
      %s380 = scalar_lea.vmem %s5, %s379
      // Predicated region
      $region37: #{stage_forward.1} parent=35 // pred_check
        %p381 = pneg %p147
      $region38: #{stage_forward.1} parent=35 // pred_check_branch
        %383 = sbr.rel (%p381) target = $region40
      $region39: #{stage_forward.1} parent=35 // pred_region
        _
      $region40: #{stage_forward.1} parent=35 // pred_fallthru
        _
      // Predicated region
      $region41: #{stage_forward.1} parent=35 // pred_check
        %p384 = pneg %p175
      $region42: #{stage_forward.1} parent=35 // pred_check_branch
        %386 = sbr.rel (%p384) target = $region44
      $region43: #{stage_forward.1} parent=35 // pred_region
        _
      $region44: #{stage_forward.1} parent=35 // pred_fallthru
        _
    $region36: #{stage_forward.1} parent=5 // pred_fallthru
      _
    %p387 = scmp.le.s32.totalorder 2, %s12
    // Predicated region
    $region45: #{stage_forward.1} parent=5 // pred_check
      %p388 = pneg %p387
    $region46: #{stage_forward.1} parent=5 // pred_check_branch
      %390 = sbr.rel (%p388) target = $region48
    $region47: #{stage_forward.1} parent=5 // pred_region
      %s391 = ssub.s32 %s12, 2
      // Predicated region
      $region49: #{stage_forward.1} parent=47 // pred_check
        %p392 = pneg %p153
      $region50: #{stage_forward.1} parent=47 // pred_check_branch
        %394 = sbr.rel (%p392) target = $region52
      $region51: #{stage_forward.1} parent=47 // pred_region
        %p395 = scmp.lt.s32.totalorder %s23, 1
        %s396 = scalar_select %p395, %s23, 1
        %p397 = scmp.lt.s32.totalorder %s24, 0
        %s398 = scalar_select %p397, %s24, 0
        %s399 = sadd.s32 %s398, %s396
        %s400 = smul.addr %s399, 8
        %s401 = scalar_lea.vmem %s4, %s400
      $region52: #{stage_forward.1} parent=47 // pred_fallthru
        _
      // Predicated region
      $region53: #{stage_forward.1} parent=47 // pred_check
        %p402 = pneg %p181
      $region54: #{stage_forward.1} parent=47 // pred_check_branch
        %404 = sbr.rel (%p402) target = $region56
      $region55: #{stage_forward.1} parent=47 // pred_region
        %p405 = scmp.lt.s32.totalorder %s23, 1
        %s406 = scalar_select %p405, %s23, 1
        %p407 = scmp.lt.s32.totalorder %s24, 0
        %s408 = scalar_select %p407, %s24, 0
        %s409 = sadd.s32 %s408, %s406
        %s410 = smul.addr %s409, 8
        %s411 = scalar_lea.vmem %s5, %s410
      $region56: #{stage_forward.1} parent=47 // pred_fallthru
        _
    $region48: #{stage_forward.1} parent=5 // pred_fallthru
      _
  $region6: #{stage_forward.1} parent=0 // loop_footer
    %s16 = sadd.s32 1, %s12
  $region7: #{stage_forward.1} parent=0 // loop_footer_branch
    %11 = sbr.rel target = $region3
  $region8: #{stage_forward.1} parent=0 // loop_exit
    _

</llo_original>
